<compile_context>
chip_gen: v7x
topology: tpu7x:2x2x1
jax: 0.10.0
libtpu: 0.0.40
codegen_flags: <defaults>
</compile_context>

<pallas_src>
import functools

import jax
import jax.numpy as jnp
from jax import lax
from jax.experimental import pallas as pl
from jax.experimental.pallas import tpu as pltpu

EPS = 1e-5
LANE = 128
SUBLANE_BF16 = 16


def _round_up(v, m):
    return (v + m - 1) // m * m


def spatial_gcn_kernel(x_ref, wkvq_ref, bkvq_ref, wcomb_ref, bcomb_ref, o_ref,
                       *, cp, c, hw, hwp):
    bb = x_ref.shape[0]

    # Hoist loop-invariant weight/bias loads out of the per-image loop.
    w_kvq = wkvq_ref[...]                                    # (3*cp, P) bf16
    b_kvq = bkvq_ref[...]                                    # (3*cp, 1) f32
    w_comb = wcomb_ref[...]                                  # (P, cp)   bf16
    b_comb = bcomb_ref[...]                                  # (P, 1)    f32

    # Loop-invariant masks, emitted only when padding was actually applied.
    row_keep = None
    if cp != c:
        row_keep = lax.broadcasted_iota(jnp.int32, (cp, cp), 0) < c
    lane_keep = None
    if hwp != hw:
        lane_keep = lax.broadcasted_iota(jnp.int32, (3 * cp, hwp), 1) < hw

    # Small static batch block (bb <= 8): fully unrolled.
    for bi in range(bb):
        x = x_ref[bi]                                        # (P, HWp) bf16

        # Fused node_k / node_v / node_q 1x1 convs: (3cp, P) @ (P, HWp).
        kvq = jnp.dot(w_kvq, x, preferred_element_type=jnp.float32) + b_kvq
        if lane_keep is not None:
            # Remove bias leakage in zero-padded spatial columns (exactness).
            kvq = jnp.where(lane_keep, kvq, 0.0)
        kvq = kvq.astype(jnp.bfloat16)                       # single cast
        xk = kvq[0 * cp:1 * cp]                              # (cp, HWp)
        xv = kvq[1 * cp:2 * cp]
        xq = kvq[2 * cp:3 * cp]

        # avT[j, i] = AV[i, j] = sum_n q[i, n] * v[j, n]; contract HW directly
        # (flash-attention style), nothing transposed in VMEM.
        avT = lax.dot_general(xv, xq, (((1,), (1,)), ((), ())),
                              preferred_element_type=jnp.float32)    # (cp, cp)

        # softmax over PyTorch dim=2 (index j) == axis 0 of avT, kept in f32.
        if row_keep is not None:
            avT = jnp.where(row_keep, avT, -1e30)            # mask padded rows
        avT = jnp.exp(avT - jnp.max(avT, axis=0, keepdims=True))
        avT = avT * pl.reciprocal(jnp.sum(avT, axis=0, keepdims=True),
                                  approx=True)               # EUP, not VALU

        # AV2[j, n] = sum_i AV[i, j] * k[i, n] = (avT @ xk)[j, n] -> (cp, HWp)
        av2 = jnp.dot(avT.astype(jnp.bfloat16), xk,
                      preferred_element_type=jnp.float32)

        # conv_wg + bn_wg + out-conv + bn_out folded into one (P, cp) weight.
        y = jnp.dot(w_comb, av2.astype(jnp.bfloat16),
                    preferred_element_type=jnp.float32) + b_comb

        # Residual add + ReLU in f32; lane-dense bf16 store.
        o_ref[bi] = jnp.maximum(y + x.astype(jnp.float32), 0.0).astype(o_ref.dtype)


def spatial_gcn_forward(x_nchw, params, *, out_dtype=jnp.bfloat16):
    """x_nchw: (B, plane, H, W) -> (B, plane, H, W) in `out_dtype` (bf16)."""
    b, p, h, w = x_nchw.shape
    hw = h * w
    c = p // 2                                # inter_plane
    cp = _round_up(c, SUBLANE_BF16)           # tile-aligned inter_plane
    hwp = _round_up(hw, LANE)                 # lane-dense spatial extent

    (wk, bk, wv, bv, wq, bq, wwg,
     g_wg, be_wg, rm_wg, rv_wg,
     wout, bout, g_o, be_o, rm_o, rv_o) = params

    # NCHW -> (B, P, HW): free reshape; bf16 halves input HBM traffic.
    x = x_nchw.reshape(b, p, hw).astype(jnp.bfloat16)
    if hwp != hw:
        x = jnp.pad(x, ((0, 0), (0, 0), (0, hwp - hw)))

    # Fuse the three 1x1 convs into one (3*cp, P) weight + (3*cp, 1) bias,
    # zero-padding each C block up to cp rows (keeps kvq slices tile-aligned).
    def pad_rows(wm, bvec):
        wp = jnp.zeros((cp, p), wm.dtype).at[:c].set(wm)
        bp = jnp.zeros((cp,), bvec.dtype).at[:c].set(bvec)
        return wp, bp

    wk_p, bk_p = pad_rows(wk, bk)
    wv_p, bv_p = pad_rows(wv, bv)
    wq_p, bq_p = pad_rows(wq, bq)
    w_kvq = jnp.concatenate([wk_p, wv_p, wq_p], axis=0).astype(jnp.bfloat16)
    b_kvq = jnp.concatenate([bk_p, bv_p, bq_p], axis=0
                            ).reshape(3 * cp, 1).astype(jnp.float32)

    # Fold conv_wg -> bn_wg (eval) -> out-conv -> bn_out (eval) into one weight.
    s_wg = g_wg / jnp.sqrt(rv_wg + EPS)                      # (c,)
    t_wg = be_wg - rm_wg * s_wg                              # (c,)
    s_o = g_o / jnp.sqrt(rv_o + EPS)                         # (p,)
    w_out_eff = wout * s_o[:, None]                          # (p, c)
    b_out_eff = bout * s_o + (be_o - rm_o * s_o)             # (p,)
    w_comb = w_out_eff @ (wwg * s_wg[:, None])               # (p, c)
    b_comb = w_out_eff @ t_wg + b_out_eff                    # (p,)
    w_comb_p = jnp.zeros((p, cp), jnp.float32).at[:, :c].set(w_comb
                                                             ).astype(jnp.bfloat16)
    b_comb = b_comb.reshape(p, 1).astype(jnp.float32)

    # Batch several images per grid step (amortize ~0.35 us/step, bigger DMAs),
    # bounded by a conservative VMEM block budget so v7x (64 MiB) stays safe.
    per_elem = (4 * p * hwp * 2                 # x + out blocks, 2x buffered, bf16
                + 3 * cp * hwp * 6              # kvq f32 + bf16 copy
                + cp * hwp * 6                  # av2 f32 + bf16 copy
                + p * hwp * 4)                  # y f32
    bb_cap = max(1, min(8, (20 * 1024 * 1024) // per_elem))
    bb = max(d for d in range(1, b + 1) if b % d == 0 and d <= bb_cap)
    grid = (b // bb,)
    # TODO(synk): on v7x with very small B an extra parallel HW-tile grid axis
    # would be needed to keep both TensorCores busy; not implemented here.

    kernel = functools.partial(spatial_gcn_kernel, cp=cp, c=c, hw=hw, hwp=hwp)

    full = lambda shape: pl.BlockSpec(shape, lambda i: tuple(0 for _ in shape))
    in_specs = [
        pl.BlockSpec((bb, p, hwp), lambda i: (i, 0, 0)),     # x batch block
        full((3 * cp, p)), full((3 * cp, 1)),                # fused K/V/Q conv
        full((p, cp)), full((p, 1)),                         # folded wg+BN+out+BN
    ]

    flops = b * (2 * 3 * cp * p * hwp + 4 * cp * cp * hwp + 2 * p * cp * hwp)
    bytes_accessed = (b * p * hwp * 2 * 2                    # bf16 in + bf16 out
                      + (3 * cp * p + p * cp) * 2 + (3 * cp + p) * 4)
    cost = pl.CostEstimate(flops=int(flops),
                           transcendentals=int(b * cp * cp),
                           bytes_accessed=int(bytes_accessed))

    out = pl.pallas_call(
        kernel,
        out_shape=jax.ShapeDtypeStruct((b, p, hwp), out_dtype),
        grid_spec=pltpu.PrefetchScalarGridSpec(
            num_scalar_prefetch=0,
            grid=grid,
            in_specs=in_specs,
            out_specs=pl.BlockSpec((bb, p, hwp), lambda i: (i, 0, 0)),
        ),
        compiler_params=pltpu.CompilerParams(
            dimension_semantics=("parallel",),
            vmem_limit_bytes=48 * 1024 * 1024),
        cost_estimate=cost,
    )(x, w_kvq, b_kvq, w_comb_p, b_comb)

    if hwp != hw:
        out = out[:, :, :hw]
    return out.reshape(b, p, h, w)


def reference_forward(x_nchw, params):
    """Pure-JAX f32 reference mirroring the PyTorch NCHW math (eval-mode BN)."""
    (wk, bk, wv, bv, wq, bq, wwg,
     g_wg, be_wg, rm_wg, rv_wg,
     wout, bout, g_o, be_o, rm_o, rv_o) = params
    b, p, h, w = x_nchw.shape
    hw = h * w
    xf = x_nchw.reshape(b, p, hw)                            # (B, P, HW)

    conv1x1 = lambda z, W, bias: jnp.einsum('oc,bcn->bon', W, z) + bias[None, :, None]
    node_k = conv1x1(xf, wk, bk)                             # (B, C, HW)
    node_v = conv1x1(xf, wv, bv)
    node_q = conv1x1(xf, wq, bq)

    node_k_t = jnp.transpose(node_k, (0, 2, 1))              # (B, HW, C)
    node_v_t = jnp.transpose(node_v, (0, 2, 1))              # (B, HW, C)
    av = jnp.einsum('bcn,bnd->bcd', node_q, node_v_t)        # (B, C, C)
    av = jax.nn.softmax(av, axis=2)
    av = jnp.einsum('bnc,bcd->bnd', node_k_t, av)            # (B, HW, C)
    av = jnp.transpose(av, (0, 2, 1))                        # (B, C, HW)

    avw = jnp.einsum('oc,bcn->bon', wwg, av)                 # conv_wg, no bias
    avw = (avw - rm_wg[None, :, None]) / jnp.sqrt(rv_wg + EPS)[None, :, None]
    avw = avw * g_wg[None, :, None] + be_wg[None, :, None]

    out = jnp.einsum('oc,bcn->bon', wout, avw) + bout[None, :, None]
    out = (out - rm_o[None, :, None]) / jnp.sqrt(rv_o + EPS)[None, :, None]
    out = out * g_o[None, :, None] + be_o[None, :, None]
    out = jnp.maximum(out.reshape(b, p, h, w) + x_nchw, 0.0)
    return out


def make_params(key, plane):
    c = plane // 2
    ks = jax.random.split(key, 8)
    wk = 0.2 * jax.random.normal(ks[0], (c, plane), jnp.float32)
    bk = 0.1 * jax.random.normal(ks[1], (c,), jnp.float32)
    wv = 0.2 * jax.random.normal(ks[2], (c, plane), jnp.float32)
    bv = 0.1 * jax.random.normal(ks[3], (c,), jnp.float32)
    wq = 0.2 * jax.random.normal(ks[4], (c, plane), jnp.float32)
    bq = 0.1 * jax.random.normal(ks[5], (c,), jnp.float32)
    wwg = 0.2 * jax.random.normal(ks[6], (c, c), jnp.float32)
    # BatchNorm1d(inter_plane) — deterministic, eval-mode stats
    g_wg = jnp.full((c,), 1.1, jnp.float32)
    be_wg = jnp.full((c,), 0.05, jnp.float32)
    rm_wg = jnp.full((c,), 0.02, jnp.float32)
    rv_wg = jnp.full((c,), 0.9, jnp.float32)
    # self.out: Conv2d(inter_plane, plane, 1) + BatchNorm2d(plane)
    wout = 0.2 * jax.random.normal(ks[7], (plane, c), jnp.float32)
    bout = jnp.full((plane,), 0.03, jnp.float32)
    g_o = jnp.full((plane,), 0.95, jnp.float32)
    be_o = jnp.full((plane,), -0.02, jnp.float32)
    rm_o = jnp.full((plane,), 0.01, jnp.float32)
    rv_o = jnp.full((plane,), 1.05, jnp.float32)
    return (wk, bk, wv, bv, wq, bq, wwg,
            g_wg, be_wg, rm_wg, rv_wg,
            wout, bout, g_o, be_o, rm_o, rv_o)


if __name__ == "__main__":
    B, PLANE, H, W = 2, 8, 16, 16
    key = jax.random.PRNGKey(0)
    kx, kp = jax.random.split(key)
    x = jax.random.normal(kx, (B, PLANE, H, W), jnp.float32)
    params = make_params(kp, PLANE)

    out = jax.block_until_ready(spatial_gcn_forward(x, params))
    ref = jax.block_until_ready(reference_forward(x, params))
    assert out.shape == (B, PLANE, H, W)

    out_f32 = out.astype(jnp.float32)
    # bf16 matmuls (f32 accumulation) + bf16 output -> looser tolerance.
    assert jnp.allclose(out_f32, ref, atol=5e-2, rtol=5e-2), (
        float(jnp.max(jnp.abs(out_f32 - ref))))
    print("KERNEL_OK")
</pallas_src>

<mosaic_0001>
module attributes {stable_mosaic.version = 11 : i64} {
  func.func @spatial_gcn_kernel(%arg0: i32, %arg1: memref<2x8x256xbf16, #tpu.memory_space<vmem>>, %arg2: memref<48x8xbf16, #tpu.memory_space<vmem>>, %arg3: memref<48x1xf32, #tpu.memory_space<vmem>>, %arg4: memref<8x16xbf16, #tpu.memory_space<vmem>>, %arg5: memref<8x1xf32, #tpu.memory_space<vmem>>, %arg6: memref<2x8x256xbf16, #tpu.memory_space<vmem>>) attributes {dimension_semantics = [#tpu.dimension_semantics<parallel>], iteration_bounds = array<i64: 1>, scalar_prefetch = 0 : i64, scratch_operands = 0 : i64, tpu.core_type = #tpu.core_type<tc>, window_params = [{transform_indices = @transform_0, window_bounds = array<i64: 2, 8, 256>}, {pipeline_mode = #tpu.pipeline_mode<synchronous>, transform_indices = @transform_1, window_bounds = array<i64: 48, 8>}, {pipeline_mode = #tpu.pipeline_mode<synchronous>, transform_indices = @transform_2, window_bounds = array<i64: 48, 1>}, {pipeline_mode = #tpu.pipeline_mode<synchronous>, transform_indices = @transform_3, window_bounds = array<i64: 8, 16>}, {pipeline_mode = #tpu.pipeline_mode<synchronous>, transform_indices = @transform_4, window_bounds = array<i64: 8, 1>}, {transform_indices = @transform_5, window_bounds = array<i64: 2, 8, 256>}]} {
    %c0 = arith.constant 0 : index
    %c0_0 = arith.constant 0 : index
    %0 = vector.load %arg2[%c0, %c0_0] : memref<48x8xbf16, #tpu.memory_space<vmem>>, vector<48x8xbf16>
    %c0_1 = arith.constant 0 : index
    %c0_2 = arith.constant 0 : index
    %1 = vector.load %arg3[%c0_1, %c0_2] : memref<48x1xf32, #tpu.memory_space<vmem>>, vector<48x1xf32>
    %c0_3 = arith.constant 0 : index
    %c0_4 = arith.constant 0 : index
    %2 = vector.load %arg4[%c0_3, %c0_4] : memref<8x16xbf16, #tpu.memory_space<vmem>>, vector<8x16xbf16>
    %c0_5 = arith.constant 0 : index
    %c0_6 = arith.constant 0 : index
    %3 = vector.load %arg5[%c0_5, %c0_6] : memref<8x1xf32, #tpu.memory_space<vmem>>, vector<8x1xf32>
    %4 = tpu.iota {dimensions = array<i32: 0>} : vector<16x16xi32>
    %c4_i32 = arith.constant 4 : i32
    %5 = vector.broadcast %c4_i32 : i32 to vector<16x16xi32>
    %6 = arith.cmpi slt, %4, %5 : vector<16x16xi32>
    %c0_7 = arith.constant 0 : index
    %c0_8 = arith.constant 0 : index
    %c0_9 = arith.constant 0 : index
    %7 = vector.load %arg1[%c0_7, %c0_8, %c0_9] : memref<2x8x256xbf16, #tpu.memory_space<vmem>>, vector<1x8x256xbf16>
    %8 = vector.shape_cast %7 : vector<1x8x256xbf16> to vector<8x256xbf16>
    %cst = arith.constant dense<0.000000e+00> : vector<48x256xf32>
    %9 = tpu.matmul %0, %8, %cst {dimension_numbers = #tpu.dot_dimension_numbers<[1], [0], [0], [1], [0, 0, 1, 1], [], []>} : vector<48x8xbf16>, vector<8x256xbf16>, vector<48x256xf32> -> vector<48x256xf32>
    %10 = vector.broadcast %1 : vector<48x1xf32> to vector<48x256xf32>
    %11 = arith.addf %9, %10 : vector<48x256xf32>
    %12 = arith.truncf %11 : vector<48x256xf32> to vector<48x256xbf16>
    %13 = vector.extract_strided_slice %12 {offsets = [0, 0], sizes = [16, 256], strides = [1, 1]} : vector<48x256xbf16> to vector<16x256xbf16>
    %14 = vector.extract_strided_slice %12 {offsets = [16, 0], sizes = [16, 256], strides = [1, 1]} : vector<48x256xbf16> to vector<16x256xbf16>
    %15 = vector.extract_strided_slice %12 {offsets = [32, 0], sizes = [16, 256], strides = [1, 1]} : vector<48x256xbf16> to vector<16x256xbf16>
    %cst_10 = arith.constant dense<0.000000e+00> : vector<16x16xf32>
    %16 = tpu.matmul %14, %15, %cst_10 {dimension_numbers = #tpu.dot_dimension_numbers<[1], [1], [0], [0], [0, 0, 1, 0], [], []>} : vector<16x256xbf16>, vector<16x256xbf16>, vector<16x16xf32> -> vector<16x16xf32>
    %cst_11 = arith.constant -1.000000e+30 : f32
    %17 = vector.broadcast %cst_11 : f32 to vector<16x16xf32>
    %18 = arith.select %6, %16, %17 : vector<16x16xi1>, vector<16x16xf32>
    %cst_12 = arith.constant dense<0xFF800000> : vector<16xf32>
    %19 = vector.multi_reduction <maximumf>, %18, %cst_12 [0] : vector<16x16xf32> to vector<16xf32>
    %20 = vector.shape_cast %19 : vector<16xf32> to vector<1x16xf32>
    %21 = vector.broadcast %20 : vector<1x16xf32> to vector<16x16xf32>
    %22 = arith.subf %18, %21 : vector<16x16xf32>
    %23 = math.exp %22 : vector<16x16xf32>
    %cst_13 = arith.constant dense<0.000000e+00> : vector<16xf32>
    %24 = vector.multi_reduction <add>, %23, %cst_13 [0] : vector<16x16xf32> to vector<16xf32>
    %25 = vector.shape_cast %24 : vector<16xf32> to vector<1x16xf32>
    %26 = tpu.reciprocal %25 {approx = true} : vector<1x16xf32> -> vector<1x16xf32>
    %27 = vector.broadcast %26 : vector<1x16xf32> to vector<16x16xf32>
    %28 = arith.mulf %23, %27 : vector<16x16xf32>
    %29 = arith.truncf %28 : vector<16x16xf32> to vector<16x16xbf16>
    %cst_14 = arith.constant dense<0.000000e+00> : vector<16x256xf32>
    %30 = tpu.matmul %29, %13, %cst_14 {dimension_numbers = #tpu.dot_dimension_numbers<[1], [0], [0], [1], [0, 0, 1, 1], [], []>} : vector<16x16xbf16>, vector<16x256xbf16>, vector<16x256xf32> -> vector<16x256xf32>
    %31 = arith.truncf %30 : vector<16x256xf32> to vector<16x256xbf16>
    %cst_15 = arith.constant dense<0.000000e+00> : vector<8x256xf32>
    %32 = tpu.matmul %2, %31, %cst_15 {dimension_numbers = #tpu.dot_dimension_numbers<[1], [0], [0], [1], [0, 0, 1, 1], [], []>} : vector<8x16xbf16>, vector<16x256xbf16>, vector<8x256xf32> -> vector<8x256xf32>
    %33 = vector.broadcast %3 : vector<8x1xf32> to vector<8x256xf32>
    %34 = arith.addf %32, %33 : vector<8x256xf32>
    %35 = arith.extf %8 : vector<8x256xbf16> to vector<8x256xf32>
    %36 = arith.addf %34, %35 : vector<8x256xf32>
    %cst_16 = arith.constant 0.000000e+00 : f32
    %37 = vector.broadcast %cst_16 : f32 to vector<8x256xf32>
    %38 = arith.maximumf %36, %37 : vector<8x256xf32>
    %39 = arith.truncf %38 : vector<8x256xf32> to vector<8x256xbf16>
    %c0_17 = arith.constant 0 : index
    %c0_18 = arith.constant 0 : index
    %c0_19 = arith.constant 0 : index
    %40 = vector.load %arg6[%c0_17, %c0_18, %c0_19] : memref<2x8x256xbf16, #tpu.memory_space<vmem>>, vector<1x8x256xbf16>
    %41 = vector.shape_cast %40 : vector<1x8x256xbf16> to vector<8x256xbf16>
    %42 = vector.shape_cast %39 : vector<8x256xbf16> to vector<1x8x256xbf16>
    tpu.vector_store %arg6[%c0_17, %c0_18, %c0_19], %42 {strides = array<i32>} : memref<2x8x256xbf16, #tpu.memory_space<vmem>>, vector<1x8x256xbf16>,
    %c1 = arith.constant 1 : index
    %c0_20 = arith.constant 0 : index
    %c0_21 = arith.constant 0 : index
    %43 = vector.load %arg1[%c1, %c0_20, %c0_21] : memref<2x8x256xbf16, #tpu.memory_space<vmem>>, vector<1x8x256xbf16>
    %44 = vector.shape_cast %43 : vector<1x8x256xbf16> to vector<8x256xbf16>
    %cst_22 = arith.constant dense<0.000000e+00> : vector<48x256xf32>
    %45 = tpu.matmul %0, %44, %cst_22 {dimension_numbers = #tpu.dot_dimension_numbers<[1], [0], [0], [1], [0, 0, 1, 1], [], []>} : vector<48x8xbf16>, vector<8x256xbf16>, vector<48x256xf32> -> vector<48x256xf32>
    %46 = vector.broadcast %1 : vector<48x1xf32> to vector<48x256xf32>
    %47 = arith.addf %45, %46 : vector<48x256xf32>
    %48 = arith.truncf %47 : vector<48x256xf32> to vector<48x256xbf16>
    %49 = vector.extract_strided_slice %48 {offsets = [0, 0], sizes = [16, 256], strides = [1, 1]} : vector<48x256xbf16> to vector<16x256xbf16>
    %50 = vector.extract_strided_slice %48 {offsets = [16, 0], sizes = [16, 256], strides = [1, 1]} : vector<48x256xbf16> to vector<16x256xbf16>
    %51 = vector.extract_strided_slice %48 {offsets = [32, 0], sizes = [16, 256], strides = [1, 1]} : vector<48x256xbf16> to vector<16x256xbf16>
    %cst_23 = arith.constant dense<0.000000e+00> : vector<16x16xf32>
    %52 = tpu.matmul %50, %51, %cst_23 {dimension_numbers = #tpu.dot_dimension_numbers<[1], [1], [0], [0], [0, 0, 1, 0], [], []>} : vector<16x256xbf16>, vector<16x256xbf16>, vector<16x16xf32> -> vector<16x16xf32>
    %cst_24 = arith.constant -1.000000e+30 : f32
    %53 = vector.broadcast %cst_24 : f32 to vector<16x16xf32>
    %54 = arith.select %6, %52, %53 : vector<16x16xi1>, vector<16x16xf32>
    %cst_25 = arith.constant dense<0xFF800000> : vector<16xf32>
    %55 = vector.multi_reduction <maximumf>, %54, %cst_25 [0] : vector<16x16xf32> to vector<16xf32>
    %56 = vector.shape_cast %55 : vector<16xf32> to vector<1x16xf32>
    %57 = vector.broadcast %56 : vector<1x16xf32> to vector<16x16xf32>
    %58 = arith.subf %54, %57 : vector<16x16xf32>
    %59 = math.exp %58 : vector<16x16xf32>
    %cst_26 = arith.constant dense<0.000000e+00> : vector<16xf32>
    %60 = vector.multi_reduction <add>, %59, %cst_26 [0] : vector<16x16xf32> to vector<16xf32>
    %61 = vector.shape_cast %60 : vector<16xf32> to vector<1x16xf32>
    %62 = tpu.reciprocal %61 {approx = true} : vector<1x16xf32> -> vector<1x16xf32>
    %63 = vector.broadcast %62 : vector<1x16xf32> to vector<16x16xf32>
    %64 = arith.mulf %59, %63 : vector<16x16xf32>
    %65 = arith.truncf %64 : vector<16x16xf32> to vector<16x16xbf16>
    %cst_27 = arith.constant dense<0.000000e+00> : vector<16x256xf32>
    %66 = tpu.matmul %65, %49, %cst_27 {dimension_numbers = #tpu.dot_dimension_numbers<[1], [0], [0], [1], [0, 0, 1, 1], [], []>} : vector<16x16xbf16>, vector<16x256xbf16>, vector<16x256xf32> -> vector<16x256xf32>
    %67 = arith.truncf %66 : vector<16x256xf32> to vector<16x256xbf16>
    %cst_28 = arith.constant dense<0.000000e+00> : vector<8x256xf32>
    %68 = tpu.matmul %2, %67, %cst_28 {dimension_numbers = #tpu.dot_dimension_numbers<[1], [0], [0], [1], [0, 0, 1, 1], [], []>} : vector<8x16xbf16>, vector<16x256xbf16>, vector<8x256xf32> -> vector<8x256xf32>
    %69 = vector.broadcast %3 : vector<8x1xf32> to vector<8x256xf32>
    %70 = arith.addf %68, %69 : vector<8x256xf32>
    %71 = arith.extf %44 : vector<8x256xbf16> to vector<8x256xf32>
    %72 = arith.addf %70, %71 : vector<8x256xf32>
    %cst_29 = arith.constant 0.000000e+00 : f32
    %73 = vector.broadcast %cst_29 : f32 to vector<8x256xf32>
    %74 = arith.maximumf %72, %73 : vector<8x256xf32>
    %75 = arith.truncf %74 : vector<8x256xf32> to vector<8x256xbf16>
    %c1_30 = arith.constant 1 : index
    %c0_31 = arith.constant 0 : index
    %c0_32 = arith.constant 0 : index
    %76 = vector.load %arg6[%c1_30, %c0_31, %c0_32] : memref<2x8x256xbf16, #tpu.memory_space<vmem>>, vector<1x8x256xbf16>
    %77 = vector.shape_cast %76 : vector<1x8x256xbf16> to vector<8x256xbf16>
    %78 = vector.shape_cast %75 : vector<8x256xbf16> to vector<1x8x256xbf16>
    tpu.vector_store %arg6[%c1_30, %c0_31, %c0_32], %78 {strides = array<i32>} : memref<2x8x256xbf16, #tpu.memory_space<vmem>>, vector<1x8x256xbf16>,
    return
  }
  func.func @transform_0(%arg0: i32) -> (i32, i32, i32) {
    %c0_i32 = arith.constant 0 : i32
    %c0_i32_0 = arith.constant 0 : i32
    %c0_i32_1 = arith.constant 0 : i32
    return %arg0, %c0_i32, %c0_i32_0 : i32, i32, i32
  }
  func.func @transform_1(%arg0: i32) -> (i32, i32) {
    %c0_i32 = arith.constant 0 : i32
    %c0_i32_0 = arith.constant 0 : i32
    %c0_i32_1 = arith.constant 0 : i32
    return %c0_i32, %c0_i32_0 : i32, i32
  }
  func.func @transform_2(%arg0: i32) -> (i32, i32) {
    %c0_i32 = arith.constant 0 : i32
    %c0_i32_0 = arith.constant 0 : i32
    %c0_i32_1 = arith.constant 0 : i32
    return %c0_i32, %c0_i32_0 : i32, i32
  }
  func.func @transform_3(%arg0: i32) -> (i32, i32) {
    %c0_i32 = arith.constant 0 : i32
    %c0_i32_0 = arith.constant 0 : i32
    %c0_i32_1 = arith.constant 0 : i32
    return %c0_i32, %c0_i32_0 : i32, i32
  }
  func.func @transform_4(%arg0: i32) -> (i32, i32) {
    %c0_i32 = arith.constant 0 : i32
    %c0_i32_0 = arith.constant 0 : i32
    %c0_i32_1 = arith.constant 0 : i32
    return %c0_i32, %c0_i32_0 : i32, i32
  }
  func.func @transform_5(%arg0: i32) -> (i32, i32, i32) {
    %c0_i32 = arith.constant 0 : i32
    %c0_i32_0 = arith.constant 0 : i32
    %c0_i32_1 = arith.constant 0 : i32
    return %arg0, %c0_i32, %c0_i32_0 : i32, i32, i32
  }
}

</mosaic_0001>

<llo_original>
// kernel: tpu_custom_call.1
$region0: #{tpu_custom_call.1}
  #allocation0 [shape = 'u32[]', space=smem, size = 0x4, offset = 0x4, fixed_abs, tag = 'smem constant byte address 0x4 - core index']
  #allocation1 [shape = 'u32[144,128]{1,0:T(1,128)}', space=vmem, size = 0x12000, scoped, tag = 'internal scratch']
  %s0 = inlined_call_operand.vmem [shape: bf16[2,8,256], index: 0, kind: input, shape index: {}]
  %s1 = inlined_call_operand.vmem [shape: bf16[48,8], index: 1, kind: input, shape index: {}]
  %s2 = inlined_call_operand.vmem [shape: f32[48,1], index: 2, kind: input, shape index: {}]
  %s3 = inlined_call_operand.vmem [shape: bf16[8,16], index: 3, kind: input, shape index: {}]
  %s4 = inlined_call_operand.vmem [shape: f32[8,1], index: 4, kind: input, shape index: {}]
  %s5 = inlined_call_operand.hbm [shape: bf16[2,8,256], index: 5, kind: output, shape index: {}]
  %s6 = sld [smem:[#allocation0]]
  $region30: #{tpu_custom_call.1} parent=0
    _
  %s8 = ssub.s32 1, %s6
  %s9 = scalar_select 0, %s8, %s6
  $region1: #{tpu_custom_call.1} parent=0
    #allocation2 [shape = 'u8[8192]{0}', space=vmem, size = 0x2000, scoped, tag = 'output window, operand 0, single buffered']
    #allocation3 [shape = 's32[1]{0}', space=sflag, size = 0x4, scoped, tag = 'scoped memory for tpu_custom_call.1']
    %10 = vsyncpa [#allocation3], 0
    // Predicated region
    $region2: #{tpu_custom_call.1} parent=1 // pred_check
      _
    $region3: #{tpu_custom_call.1} parent=1 // pred_check_branch
      %12 = sbr.rel (0) target = $region5
    $region4: #{tpu_custom_call.1} parent=1 // pred_region
      _
    $region5: #{tpu_custom_call.1} parent=1 // pred_fallthru
      _
    // Predicated region
    $region6: #{tpu_custom_call.1} parent=1 // pred_check
      _
    $region7: #{tpu_custom_call.1} parent=1 // pred_check_branch
      %14 = sbr.rel (0) target = $region9
    $region8: #{tpu_custom_call.1} parent=1 // pred_region
      _
    $region9: #{tpu_custom_call.1} parent=1 // pred_fallthru
      _
    // Predicated region
    $region10: #{tpu_custom_call.1} parent=1 // pred_check
      _
    $region11: #{tpu_custom_call.1} parent=1 // pred_check_branch
      %16 = sbr.rel (0) target = $region13
    $region12: #{tpu_custom_call.1} parent=1 // pred_region
      _
    $region13: #{tpu_custom_call.1} parent=1 // pred_fallthru
      _
    // Predicated region
    $region14: #{tpu_custom_call.1} parent=1 // pred_check
      _
    $region15: #{tpu_custom_call.1} parent=1 // pred_check_branch
      %18 = sbr.rel (0) target = $region17
    $region16: #{tpu_custom_call.1} parent=1 // pred_region
      _
    $region17: #{tpu_custom_call.1} parent=1 // pred_fallthru
      _
    // Predicated region
    $region18: #{tpu_custom_call.1} parent=1 // pred_check
      _
    $region19: #{tpu_custom_call.1} parent=1 // pred_check_branch
      %20 = sbr.rel (0) target = $region21
    $region20: #{tpu_custom_call.1} parent=1 // pred_region
      _
    $region21: #{tpu_custom_call.1} parent=1 // pred_fallthru
      _
    %v22 = vld [vmem:[%s1] sm:$0xf]
    %v23 = vld [vmem:[%s1 + $0x4] sm:$0xf]
    %v24 = vld [vmem:[%s1 + $0x8] sm:$0xf]
    %v25 = vld [vmem:[%s1 + $0xc] sm:$0xf]
    %v26 = vld [vmem:[%s1 + $0x10] sm:$0xf]
    %v27 = vld [vmem:[%s1 + $0x14] sm:$0xf]
    %v28 = vld [vmem:[%s2] sm:$0xff]
    %v29 = vld [vmem:[%s2 + $0x8] sm:$0xff]
    %v30 = vld [vmem:[%s2 + $0x10] sm:$0xff]
    %v31 = vld [vmem:[%s2 + $0x18] sm:$0xff]
    %v32 = vld [vmem:[%s2 + $0x20] sm:$0xff]
    %v33 = vld [vmem:[%s2 + $0x28] sm:$0xff]
    %v34 = vld [vmem:[%s3] sm:$0xf]
    %v35 = vld [vmem:[%s4] sm:$0xff]
    %v36 = vlaneseq
    %v37 = vshrl.u32 %v36, 7
    %v38 = vadd.s32 %v37, 8
    %vm39 = vcmp.lt.s32.totalorder %v37, 4
    %vm40 = vcmp.lt.s32.totalorder %v38, 4
    %v41 = vld [vmem:[%s0] sm:$0xff]
    %43 = vset.pattern.permute.xlu0 0
    %44 = vperm.xlu0 %43, %v28
    %v45 = vpop.permute.xlu0 %44
    %48 = vset.pattern.permute.xlu0 0
    %49 = vperm.xlu0 %48, %v29
    %v50 = vpop.permute.xlu0 %49
    %53 = vset.pattern.permute.xlu0 0
    %54 = vperm.xlu0 %53, %v30
    %v55 = vpop.permute.xlu0 %54
    %58 = vset.pattern.permute.xlu0 0
    %59 = vperm.xlu0 %58, %v31
    %v60 = vpop.permute.xlu0 %59
    %63 = vset.pattern.permute.xlu0 0
    %64 = vperm.xlu0 %63, %v32
    %v65 = vpop.permute.xlu0 %64
    %68 = vset.pattern.permute.xlu0 0
    %69 = vperm.xlu0 %68, %v33
    %v70 = vpop.permute.xlu0 %69
    %v78 = vunpack.c.l.b16 %v22
    %v79 = vunpack.c.l.b16 %v23
    %v80 = vunpack.c.l.b16 %v24
    %v81 = vunpack.c.l.b16 %v25
    %v82 = vunpack.c.l.b16 %v26
    %v83 = vunpack.c.l.b16 %v27
    %v84 = vpack.c.b16 %v79, %v78
    %v85 = vpack.c.b16 %v81, %v80
    %v86 = vpack.c.b16 %v83, %v82
    %v88 = vunpack.c.l.b16 %v41
    %v89 = vunpack.c.h.b16 %v41
    %v90 = vpack.c.b16 %v88, %v88
    %v91 = vpack.c.b16 %v89, %v89
    %vm92 = vcmask 64512
    %v94 = vsel %vm92, %v84, 0
    %v97 = vsel %vm92, %v85, 0
    %v100 = vsel %vm92, %v86, 0
    %vm102 = vcmask 1043456
    %v104 = vsel %vm102, %v90, 0
    %v107 = vsel %vm102, %v91, 0
    %109 = vmatprep.subr.bf16.mxu0 %v107
    %110 = vmatpush1.bf16.msra.mxu0 %v104
    %111 = vmatprep.subr.bf16.mxu0 0
    %112 = vmatpush1.bf16.msra.mxu0 0
    %113 = vmatprep.subr.bf16.mxu0 0
    %114 = vmatpush1.bf16.msra.mxu0 0
    %115 = vmatprep.subr.bf16.mxu0 0
    %116 = vmatpush1.bf16.msra.mxu0 0
    %117 = vmatprep.subr.bf16.mxu0 0
    %118 = vmatpush1.bf16.msra.mxu0 0
    %119 = vmatprep.subr.bf16.mxu0 0
    %120 = vmatpush1.bf16.msra.mxu0 0
    %121 = vmatprep.subr.bf16.mxu0 0
    %122 = vmatpush1.bf16.msra.mxu0 0
    %123 = vmatprep.subr.bf16.mxu0 0
    %124 = vmatpush1.bf16.msra.mxu0 0
    %125 = vmatprep.subr.bf16.mxu0 0
    %126 = vmatpush1.bf16.msra.mxu0 0
    %127 = vmatprep.subr.bf16.mxu0 0
    %128 = vmatpush1.bf16.msra.mxu0 0
    %129 = vmatprep.subr.bf16.mxu0 0
    %130 = vmatpush1.bf16.msra.mxu0 0
    %131 = vmatprep.subr.bf16.mxu0 0
    %132 = vmatpush1.bf16.msra.mxu0 0
    %133 = vmatprep.subr.bf16.mxu0 0
    %134 = vmatpush1.bf16.msra.mxu0 0
    %135 = vmatprep.subr.bf16.mxu0 0
    %136 = vmatpush1.bf16.msra.mxu0 0
    %137 = vmatprep.subr.bf16.mxu0 0
    %138 = vmatpush1.bf16.msra.mxu0 0
    %139 = vmatprep.subr.bf16.mxu0 0
    %140 = vmatpush1.bf16.msra.mxu0 0
    %141 = vmatprep.mubr.bf16.mxu0 0
    %142 = vmatmul.mubr.bf16.gmra.mrb[0].mxu0 %v94
    %v143 = vpop.f32.mrb[0].mxu0
    %v144 = vadd.f32 %v45, %v143
    %v145 = vpop.f32.mrb[0].mxu0
    %v146 = vadd.f32 %v45, %v145
    %v147 = vpop.f32.mrb[0].mxu0
    %v148 = vadd.f32 %v50, %v147
    %v149 = vpop.f32.mrb[0].mxu0
    %v150 = vadd.f32 %v50, %v149
    %151 = vmatprep.mubr.bf16.mxu0 0
    %152 = vmatmul.mubr.bf16.gmra.mrb[0].mxu0 %v97
    %v153 = vpop.f32.mrb[0].mxu0
    %v154 = vadd.f32 %v55, %v153
    %v155 = vpop.f32.mrb[0].mxu0
    %v156 = vadd.f32 %v55, %v155
    %v157 = vpop.f32.mrb[0].mxu0
    %v158 = vadd.f32 %v60, %v157
    %v159 = vpop.f32.mrb[0].mxu0
    %v160 = vadd.f32 %v60, %v159
    %161 = vmatprep.mubr.bf16.mxu0 0
    %162 = vmatmul.mubr.bf16.gmra.mrb[0].mxu0 %v100
    %v163 = vpop.f32.mrb[0].mxu0
    %v164 = vadd.f32 %v65, %v163
    %v165 = vpop.f32.mrb[0].mxu0
    %v166 = vadd.f32 %v65, %v165
    %v167 = vpop.f32.mrb[0].mxu0
    %v168 = vadd.f32 %v70, %v167
    %v169 = vpop.f32.mrb[0].mxu0
    %v170 = vadd.f32 %v70, %v169
    %171 = vdwg.mxu0
    %v172 = vpack.c.bf16 %v148, %v144
    %v173 = vpack.c.bf16 %v150, %v146
    %v174 = vpack.c.bf16 %v158, %v154
    %v175 = vpack.c.bf16 %v160, %v156
    %v176 = vpack.c.bf16 %v168, %v164
    %v177 = vpack.c.bf16 %v170, %v166
    %178 = vmatprep.subr.bf16.mxu0 %v177
    %179 = vmatpush1.bf16.xpose.msra.mxu0 %v176
    %180 = vmatprep.subr.bf16.mxu0 0
    %181 = vmatpush1.bf16.xpose.msra.mxu0 0
    %182 = vmatprep.subr.bf16.mxu0 0
    %183 = vmatpush1.bf16.xpose.msra.mxu0 0
    %184 = vmatprep.subr.bf16.mxu0 0
    %185 = vmatpush1.bf16.xpose.msra.mxu0 0
    %186 = vmatprep.subr.bf16.mxu0 0
    %187 = vmatpush1.bf16.xpose.msra.mxu0 0
    %188 = vmatprep.subr.bf16.mxu0 0
    %189 = vmatpush1.bf16.xpose.msra.mxu0 0
    %190 = vmatprep.subr.bf16.mxu0 0
    %191 = vmatpush1.bf16.xpose.msra.mxu0 0
    %192 = vmatprep.subr.bf16.mxu0 0
    %193 = vmatpush1.bf16.xpose.msra.mxu0 0
    %194 = vmatprep.subr.bf16.mxu0 0
    %195 = vmatpush1.bf16.xpose.msra.mxu0 0
    %196 = vmatprep.subr.bf16.mxu0 0
    %197 = vmatpush1.bf16.xpose.msra.mxu0 0
    %198 = vmatprep.subr.bf16.mxu0 0
    %199 = vmatpush1.bf16.xpose.msra.mxu0 0
    %200 = vmatprep.subr.bf16.mxu0 0
    %201 = vmatpush1.bf16.xpose.msra.mxu0 0
    %202 = vmatprep.subr.bf16.mxu0 0
    %203 = vmatpush1.bf16.xpose.msra.mxu0 0
    %204 = vmatprep.subr.bf16.mxu0 0
    %205 = vmatpush1.bf16.xpose.msra.mxu0 0
    %206 = vmatprep.subr.bf16.mxu0 0
    %207 = vmatpush1.bf16.xpose.msra.mxu0 0
    %208 = vmatprep.subr.bf16.mxu0 0
    %209 = vmatpush1.bf16.xpose.msra.mxu0 0
    %210 = vmatprep.mubr.bf16.mxu0 %v175
    %211 = vmatmul.mubr.bf16.gmra.mrb[0].mxu0 %v174
    %v212 = vpop.f32.mrb[0].mxu0
    %v213 = vadd.f32 0.0, %v212
    %v214 = vpop.f32.mrb[0].mxu0
    %v215 = vpop.f32.mrb[0].mxu0
    %v216 = vadd.f32 0.0, %v215
    %v217 = vpop.f32.mrb[0].mxu0
    %218 = vdwg.mxu0
    %v219 = vsel %vm39, %v213, -1e+30
    %v220 = vsel %vm40, %v216, -1e+30
    %vm221 = vcmask 130048
    %v222 = vsel %vm221, %v219, -inf
    %v223 = vsel %vm221, %v220, -inf
    %v224 = vmax.f32 %v222, %v223
    %v225 = vrot.slane %v224, 4
    %v226 = vmax.f32 %v224, %v225
    %v227 = vrot.slane %v226, 2
    %v228 = vmax.f32 %v226, %v227
    %v229 = vrot.slane %v228, 1
    %v230 = vmax.f32 %v228, %v229
    %v231 = vsub.f32 %v219, %v230
    %v232 = vsub.f32 %v220, %v230
    %v233 = vmul.f32 %v231, 1.442695
    %v234 = vpow.pop %v233
    %v235 = vmul.f32 %v232, 1.442695
    %v236 = vpow.pop %v235
    %v237 = vsel %vm221, %v234, 0.0
    %v238 = vsel %vm221, %v236, 0.0
    %v239 = vadd.f32 %v237, %v238
    %v240 = vrot.slane %v239, 4
    %v241 = vadd.f32 %v239, %v240
    %v242 = vrot.slane %v241, 2
    %v243 = vadd.f32 %v241, %v242
    %v244 = vrot.slane %v243, 1
    %v245 = vadd.f32 %v243, %v244
    %v246 = vrcp.pop %v245
    %v247 = vmul.f32 %v234, %v246
    %v248 = vmul.f32 %v236, %v246
    %v249 = vpack.c.bf16 %v248, %v247
    %v251 = vsel %vm221, %v249, 0
    %253 = vmatprep.subr.bf16.mxu0 %v173
    %254 = vmatpush1.bf16.msra.mxu0 %v172
    %255 = vmatprep.subr.bf16.mxu0 0
    %256 = vmatpush1.bf16.msra.mxu0 0
    %257 = vmatprep.subr.bf16.mxu0 0
    %258 = vmatpush1.bf16.msra.mxu0 0
    %259 = vmatprep.subr.bf16.mxu0 0
    %260 = vmatpush1.bf16.msra.mxu0 0
    %261 = vmatprep.subr.bf16.mxu0 0
    %262 = vmatpush1.bf16.msra.mxu0 0
    %263 = vmatprep.subr.bf16.mxu0 0
    %264 = vmatpush1.bf16.msra.mxu0 0
    %265 = vmatprep.subr.bf16.mxu0 0
    %266 = vmatpush1.bf16.msra.mxu0 0
    %267 = vmatprep.subr.bf16.mxu0 0
    %268 = vmatpush1.bf16.msra.mxu0 0
    %269 = vmatprep.subr.bf16.mxu0 0
    %270 = vmatpush1.bf16.msra.mxu0 0
    %271 = vmatprep.subr.bf16.mxu0 0
    %272 = vmatpush1.bf16.msra.mxu0 0
    %273 = vmatprep.subr.bf16.mxu0 0
    %274 = vmatpush1.bf16.msra.mxu0 0
    %275 = vmatprep.subr.bf16.mxu0 0
    %276 = vmatpush1.bf16.msra.mxu0 0
    %277 = vmatprep.subr.bf16.mxu0 0
    %278 = vmatpush1.bf16.msra.mxu0 0
    %279 = vmatprep.subr.bf16.mxu0 0
    %280 = vmatpush1.bf16.msra.mxu0 0
    %281 = vmatprep.subr.bf16.mxu0 0
    %282 = vmatpush1.bf16.msra.mxu0 0
    %283 = vmatprep.subr.bf16.mxu0 0
    %284 = vmatpush1.bf16.msra.mxu0 0
    %285 = vmatprep.mubr.bf16.mxu0 0
    %286 = vmatmul.mubr.bf16.gmra.mrb[0].mxu0 %v251
    %v287 = vpop.f32.mrb[0].mxu0
    %v288 = vadd.f32 0.0, %v287
    %v289 = vpop.f32.mrb[0].mxu0
    %v290 = vadd.f32 0.0, %v289
    %v291 = vpop.f32.mrb[0].mxu0
    %v292 = vadd.f32 0.0, %v291
    %v293 = vpop.f32.mrb[0].mxu0
    %v294 = vadd.f32 0.0, %v293
    %295 = vdwg.mxu0
    %v296 = vpack.c.bf16 %v292, %v288
    %v297 = vpack.c.bf16 %v294, %v290
    %299 = vset.pattern.permute.xlu0 0
    %300 = vperm.xlu0 %299, %v35
    %v301 = vpop.permute.xlu0 %300
    %v304 = vsel %vm221, %v34, 0
    %306 = vmatprep.subr.bf16.mxu0 %v297
    %307 = vmatpush1.bf16.msra.mxu0 %v296
    %308 = vmatprep.subr.bf16.mxu0 0
    %309 = vmatpush1.bf16.msra.mxu0 0
    %310 = vmatprep.subr.bf16.mxu0 0
    %311 = vmatpush1.bf16.msra.mxu0 0
    %312 = vmatprep.subr.bf16.mxu0 0
    %313 = vmatpush1.bf16.msra.mxu0 0
    %314 = vmatprep.subr.bf16.mxu0 0
    %315 = vmatpush1.bf16.msra.mxu0 0
    %316 = vmatprep.subr.bf16.mxu0 0
    %317 = vmatpush1.bf16.msra.mxu0 0
    %318 = vmatprep.subr.bf16.mxu0 0
    %319 = vmatpush1.bf16.msra.mxu0 0
    %320 = vmatprep.subr.bf16.mxu0 0
    %321 = vmatpush1.bf16.msra.mxu0 0
    %322 = vmatprep.subr.bf16.mxu0 0
    %323 = vmatpush1.bf16.msra.mxu0 0
    %324 = vmatprep.subr.bf16.mxu0 0
    %325 = vmatpush1.bf16.msra.mxu0 0
    %326 = vmatprep.subr.bf16.mxu0 0
    %327 = vmatpush1.bf16.msra.mxu0 0
    %328 = vmatprep.subr.bf16.mxu0 0
    %329 = vmatpush1.bf16.msra.mxu0 0
    %330 = vmatprep.subr.bf16.mxu0 0
    %331 = vmatpush1.bf16.msra.mxu0 0
    %332 = vmatprep.subr.bf16.mxu0 0
    %333 = vmatpush1.bf16.msra.mxu0 0
    %334 = vmatprep.subr.bf16.mxu0 0
    %335 = vmatpush1.bf16.msra.mxu0 0
    %336 = vmatprep.subr.bf16.mxu0 0
    %337 = vmatpush1.bf16.msra.mxu0 0
    %338 = vmatprep.mubr.bf16.mxu0 0
    %339 = vmatmul.mubr.bf16.gmra.mrb[0].mxu0 %v304
    %v340 = vpop.f32.mrb[0].mxu0
    %v341 = vadd.f32 %v301, %v340
    %v342 = vpop.f32.mrb[0].mxu0
    %v343 = vadd.f32 %v301, %v342
    %v344 = vpop.f32.mrb[0].mxu0
    %v345 = vpop.f32.mrb[0].mxu0
    %346 = vdwg.mxu0
    %v347 = vunpack.c.l.bf16 %v41
    %v348 = vunpack.c.h.bf16 %v41
    %v349 = vadd.f32 %v341, %v347
    %v350 = vadd.f32 %v343, %v348
    %v351 = vmax.f32 %v349, 0.0
    %v352 = vmax.f32 %v350, 0.0
    %v353 = vpack.c.bf16 %v351, %v351
    %v354 = vpack.c.bf16 %v352, %v352
    %v357 = vunpack.c.l.b16 %v353
    %v358 = vunpack.c.l.b16 %v354
    %v359 = vpack.c.b16 %v358, %v357
    %361 = vst [vmem:[#allocation2] sm:$0xff] %v359
    %s362 = scalar_lea.vmem %s0, 8
    %v363 = vld [vmem:[%s362] sm:$0xff]
    %v365 = vunpack.c.l.b16 %v363
    %v366 = vunpack.c.h.b16 %v363
    %v367 = vpack.c.b16 %v365, %v365
    %v368 = vpack.c.b16 %v366, %v366
    %v370 = vsel %vm102, %v367, 0
    %v373 = vsel %vm102, %v368, 0
    %375 = vmatprep.subr.bf16.mxu0 %v373
    %376 = vmatpush1.bf16.msra.mxu0 %v370
    %377 = vmatprep.subr.bf16.mxu0 0
    %378 = vmatpush1.bf16.msra.mxu0 0
    %379 = vmatprep.subr.bf16.mxu0 0
    %380 = vmatpush1.bf16.msra.mxu0 0
    %381 = vmatprep.subr.bf16.mxu0 0
    %382 = vmatpush1.bf16.msra.mxu0 0
    %383 = vmatprep.subr.bf16.mxu0 0
    %384 = vmatpush1.bf16.msra.mxu0 0
    %385 = vmatprep.subr.bf16.mxu0 0
    %386 = vmatpush1.bf16.msra.mxu0 0
    %387 = vmatprep.subr.bf16.mxu0 0
    %388 = vmatpush1.bf16.msra.mxu0 0
    %389 = vmatprep.subr.bf16.mxu0 0
    %390 = vmatpush1.bf16.msra.mxu0 0
    %391 = vmatprep.subr.bf16.mxu0 0
    %392 = vmatpush1.bf16.msra.mxu0 0
    %393 = vmatprep.subr.bf16.mxu0 0
    %394 = vmatpush1.bf16.msra.mxu0 0
    %395 = vmatprep.subr.bf16.mxu0 0
    %396 = vmatpush1.bf16.msra.mxu0 0
    %397 = vmatprep.subr.bf16.mxu0 0
    %398 = vmatpush1.bf16.msra.mxu0 0
    %399 = vmatprep.subr.bf16.mxu0 0
    %400 = vmatpush1.bf16.msra.mxu0 0
    %401 = vmatprep.subr.bf16.mxu0 0
    %402 = vmatpush1.bf16.msra.mxu0 0
    %403 = vmatprep.subr.bf16.mxu0 0
    %404 = vmatpush1.bf16.msra.mxu0 0
    %405 = vmatprep.subr.bf16.mxu0 0
    %406 = vmatpush1.bf16.msra.mxu0 0
    %407 = vmatprep.mubr.bf16.mxu0 0
    %408 = vmatmul.mubr.bf16.gmra.mrb[0].mxu0 %v94
    %v409 = vpop.f32.mrb[0].mxu0
    %v410 = vadd.f32 %v45, %v409
    %v411 = vpop.f32.mrb[0].mxu0
    %v412 = vadd.f32 %v45, %v411
    %v413 = vpop.f32.mrb[0].mxu0
    %v414 = vadd.f32 %v50, %v413
    %v415 = vpop.f32.mrb[0].mxu0
    %v416 = vadd.f32 %v50, %v415
    %417 = vmatprep.mubr.bf16.mxu0 0
    %418 = vmatmul.mubr.bf16.gmra.mrb[0].mxu0 %v97
    %v419 = vpop.f32.mrb[0].mxu0
    %v420 = vadd.f32 %v55, %v419
    %v421 = vpop.f32.mrb[0].mxu0
    %v422 = vadd.f32 %v55, %v421
    %v423 = vpop.f32.mrb[0].mxu0
    %v424 = vadd.f32 %v60, %v423
    %v425 = vpop.f32.mrb[0].mxu0
    %v426 = vadd.f32 %v60, %v425
    %427 = vmatprep.mubr.bf16.mxu0 0
    %428 = vmatmul.mubr.bf16.gmra.mrb[0].mxu0 %v100
    %v429 = vpop.f32.mrb[0].mxu0
    %v430 = vadd.f32 %v65, %v429
    %v431 = vpop.f32.mrb[0].mxu0
    %v432 = vadd.f32 %v65, %v431
    %v433 = vpop.f32.mrb[0].mxu0
    %v434 = vadd.f32 %v70, %v433
    %v435 = vpop.f32.mrb[0].mxu0
    %v436 = vadd.f32 %v70, %v435
    %437 = vdwg.mxu0
    %v438 = vpack.c.bf16 %v414, %v410
    %v439 = vpack.c.bf16 %v416, %v412
    %v440 = vpack.c.bf16 %v424, %v420
    %v441 = vpack.c.bf16 %v426, %v422
    %v442 = vpack.c.bf16 %v434, %v430
    %v443 = vpack.c.bf16 %v436, %v432
    %444 = vmatprep.subr.bf16.mxu0 %v443
    %445 = vmatpush1.bf16.xpose.msra.mxu0 %v442
    %446 = vmatprep.subr.bf16.mxu0 0
    %447 = vmatpush1.bf16.xpose.msra.mxu0 0
    %448 = vmatprep.subr.bf16.mxu0 0
    %449 = vmatpush1.bf16.xpose.msra.mxu0 0
    %450 = vmatprep.subr.bf16.mxu0 0
    %451 = vmatpush1.bf16.xpose.msra.mxu0 0
    %452 = vmatprep.subr.bf16.mxu0 0
    %453 = vmatpush1.bf16.xpose.msra.mxu0 0
    %454 = vmatprep.subr.bf16.mxu0 0
    %455 = vmatpush1.bf16.xpose.msra.mxu0 0
    %456 = vmatprep.subr.bf16.mxu0 0
    %457 = vmatpush1.bf16.xpose.msra.mxu0 0
    %458 = vmatprep.subr.bf16.mxu0 0
    %459 = vmatpush1.bf16.xpose.msra.mxu0 0
    %460 = vmatprep.subr.bf16.mxu0 0
    %461 = vmatpush1.bf16.xpose.msra.mxu0 0
    %462 = vmatprep.subr.bf16.mxu0 0
    %463 = vmatpush1.bf16.xpose.msra.mxu0 0
    %464 = vmatprep.subr.bf16.mxu0 0
    %465 = vmatpush1.bf16.xpose.msra.mxu0 0
    %466 = vmatprep.subr.bf16.mxu0 0
    %467 = vmatpush1.bf16.xpose.msra.mxu0 0
    %468 = vmatprep.subr.bf16.mxu0 0
    %469 = vmatpush1.bf16.xpose.msra.mxu0 0
    %470 = vmatprep.subr.bf16.mxu0 0
    %471 = vmatpush1.bf16.xpose.msra.mxu0 0
    %472 = vmatprep.subr.bf16.mxu0 0
    %473 = vmatpush1.bf16.xpose.msra.mxu0 0
    %474 = vmatprep.subr.bf16.mxu0 0
    %475 = vmatpush1.bf16.xpose.msra.mxu0 0
    %476 = vmatprep.mubr.bf16.mxu0 %v441
    %477 = vmatmul.mubr.bf16.gmra.mrb[0].mxu0 %v440
    %v478 = vpop.f32.mrb[0].mxu0
    %v479 = vadd.f32 0.0, %v478
    %v480 = vpop.f32.mrb[0].mxu0
    %v481 = vpop.f32.mrb[0].mxu0
    %v482 = vadd.f32 0.0, %v481
    %v483 = vpop.f32.mrb[0].mxu0
    %484 = vdwg.mxu0
    %v485 = vsel %vm39, %v479, -1e+30
    %v486 = vsel %vm40, %v482, -1e+30
    %v487 = vsel %vm221, %v485, -inf
    %v488 = vsel %vm221, %v486, -inf
    %v489 = vmax.f32 %v487, %v488
    %v490 = vrot.slane %v489, 4
    %v491 = vmax.f32 %v489, %v490
    %v492 = vrot.slane %v491, 2
    %v493 = vmax.f32 %v491, %v492
    %v494 = vrot.slane %v493, 1
    %v495 = vmax.f32 %v493, %v494
    %v496 = vsub.f32 %v485, %v495
    %v497 = vsub.f32 %v486, %v495
    %v498 = vmul.f32 %v496, 1.442695
    %v499 = vpow.pop %v498
    %v500 = vmul.f32 %v497, 1.442695
    %v501 = vpow.pop %v500
    %v502 = vsel %vm221, %v499, 0.0
    %v503 = vsel %vm221, %v501, 0.0
    %v504 = vadd.f32 %v502, %v503
    %v505 = vrot.slane %v504, 4
    %v506 = vadd.f32 %v504, %v505
    %v507 = vrot.slane %v506, 2
    %v508 = vadd.f32 %v506, %v507
    %v509 = vrot.slane %v508, 1
    %v510 = vadd.f32 %v508, %v509
    %v511 = vrcp.pop %v510
    %v512 = vmul.f32 %v499, %v511
    %v513 = vmul.f32 %v501, %v511
    %v514 = vpack.c.bf16 %v513, %v512
    %v516 = vsel %vm221, %v514, 0
    %518 = vmatprep.subr.bf16.mxu0 %v439
    %519 = vmatpush1.bf16.msra.mxu0 %v438
    %520 = vmatprep.subr.bf16.mxu0 0
    %521 = vmatpush1.bf16.msra.mxu0 0
    %522 = vmatprep.subr.bf16.mxu0 0
    %523 = vmatpush1.bf16.msra.mxu0 0
    %524 = vmatprep.subr.bf16.mxu0 0
    %525 = vmatpush1.bf16.msra.mxu0 0
    %526 = vmatprep.subr.bf16.mxu0 0
    %527 = vmatpush1.bf16.msra.mxu0 0
    %528 = vmatprep.subr.bf16.mxu0 0
    %529 = vmatpush1.bf16.msra.mxu0 0
    %530 = vmatprep.subr.bf16.mxu0 0
    %531 = vmatpush1.bf16.msra.mxu0 0
    %532 = vmatprep.subr.bf16.mxu0 0
    %533 = vmatpush1.bf16.msra.mxu0 0
    %534 = vmatprep.subr.bf16.mxu0 0
    %535 = vmatpush1.bf16.msra.mxu0 0
    %536 = vmatprep.subr.bf16.mxu0 0
    %537 = vmatpush1.bf16.msra.mxu0 0
    %538 = vmatprep.subr.bf16.mxu0 0
    %539 = vmatpush1.bf16.msra.mxu0 0
    %540 = vmatprep.subr.bf16.mxu0 0
    %541 = vmatpush1.bf16.msra.mxu0 0
    %542 = vmatprep.subr.bf16.mxu0 0
    %543 = vmatpush1.bf16.msra.mxu0 0
    %544 = vmatprep.subr.bf16.mxu0 0
    %545 = vmatpush1.bf16.msra.mxu0 0
    %546 = vmatprep.subr.bf16.mxu0 0
    %547 = vmatpush1.bf16.msra.mxu0 0
    %548 = vmatprep.subr.bf16.mxu0 0
    %549 = vmatpush1.bf16.msra.mxu0 0
    %550 = vmatprep.mubr.bf16.mxu0 0
    %551 = vmatmul.mubr.bf16.gmra.mrb[0].mxu0 %v516
    %v552 = vpop.f32.mrb[0].mxu0
    %v553 = vadd.f32 0.0, %v552
    %v554 = vpop.f32.mrb[0].mxu0
    %v555 = vadd.f32 0.0, %v554
    %v556 = vpop.f32.mrb[0].mxu0
    %v557 = vadd.f32 0.0, %v556
    %v558 = vpop.f32.mrb[0].mxu0
    %v559 = vadd.f32 0.0, %v558
    %560 = vdwg.mxu0
    %v561 = vpack.c.bf16 %v557, %v553
    %v562 = vpack.c.bf16 %v559, %v555
    %563 = vmatprep.subr.bf16.mxu0 %v562
    %564 = vmatpush1.bf16.msra.mxu0 %v561
    %565 = vmatprep.subr.bf16.mxu0 0
    %566 = vmatpush1.bf16.msra.mxu0 0
    %567 = vmatprep.subr.bf16.mxu0 0
    %568 = vmatpush1.bf16.msra.mxu0 0
    %569 = vmatprep.subr.bf16.mxu0 0
    %570 = vmatpush1.bf16.msra.mxu0 0
    %571 = vmatprep.subr.bf16.mxu0 0
    %572 = vmatpush1.bf16.msra.mxu0 0
    %573 = vmatprep.subr.bf16.mxu0 0
    %574 = vmatpush1.bf16.msra.mxu0 0
    %575 = vmatprep.subr.bf16.mxu0 0
    %576 = vmatpush1.bf16.msra.mxu0 0
    %577 = vmatprep.subr.bf16.mxu0 0
    %578 = vmatpush1.bf16.msra.mxu0 0
    %579 = vmatprep.subr.bf16.mxu0 0
    %580 = vmatpush1.bf16.msra.mxu0 0
    %581 = vmatprep.subr.bf16.mxu0 0
    %582 = vmatpush1.bf16.msra.mxu0 0
    %583 = vmatprep.subr.bf16.mxu0 0
    %584 = vmatpush1.bf16.msra.mxu0 0
    %585 = vmatprep.subr.bf16.mxu0 0
    %586 = vmatpush1.bf16.msra.mxu0 0
    %587 = vmatprep.subr.bf16.mxu0 0
    %588 = vmatpush1.bf16.msra.mxu0 0
    %589 = vmatprep.subr.bf16.mxu0 0
    %590 = vmatpush1.bf16.msra.mxu0 0
    %591 = vmatprep.subr.bf16.mxu0 0
    %592 = vmatpush1.bf16.msra.mxu0 0
    %593 = vmatprep.subr.bf16.mxu0 0
    %594 = vmatpush1.bf16.msra.mxu0 0
    %595 = vmatprep.mubr.bf16.mxu0 0
    %596 = vmatmul.mubr.bf16.gmra.mrb[0].mxu0 %v304
    %v597 = vpop.f32.mrb[0].mxu0
    %v598 = vadd.f32 %v301, %v597
    %v599 = vpop.f32.mrb[0].mxu0
    %v600 = vadd.f32 %v301, %v599
    %v601 = vpop.f32.mrb[0].mxu0
    %v602 = vpop.f32.mrb[0].mxu0
    %603 = vdwg.mxu0
    %v604 = vunpack.c.l.bf16 %v363
    %v605 = vunpack.c.h.bf16 %v363
    %v606 = vadd.f32 %v598, %v604
    %v607 = vadd.f32 %v600, %v605
    %v608 = vmax.f32 %v606, 0.0
    %v609 = vmax.f32 %v607, 0.0
    %v610 = vpack.c.bf16 %v608, %v608
    %v611 = vpack.c.bf16 %v609, %v609
    %v614 = vunpack.c.l.b16 %v610
    %v615 = vunpack.c.l.b16 %v611
    %v616 = vpack.c.b16 %v615, %v614
    %s618 = scalar_lea.vmem [#allocation2], 8
    %619 = vst [vmem:[%s618] sm:$0xff] %v616
    // Predicated region
    $region22: #{tpu_custom_call.1} parent=1 // pred_check
      _
    $region23: #{tpu_custom_call.1} parent=1 // pred_check_branch
      %621 = sbr.rel (0) target = $region25
    $region24: #{tpu_custom_call.1} parent=1 // pred_region
      %s623 = ssub.s32 256, 256
      %624 = vsyncadd [#allocation3], %s623
      %s625 = sshll.u32 [#allocation2], 4
      %s626 = int_to_ptr.vmem [resolvable:$true] %s625
      %631 = dma.vmem_to_hbm [thread:$0]  %s626, 256, %s5, [#allocation3], 128, 128, 8
    $region25: #{tpu_custom_call.1} parent=1 // pred_fallthru
      _
    // Predicated region
    $region26: #{tpu_custom_call.1} parent=1 // pred_check
      _
    $region27: #{tpu_custom_call.1} parent=1 // pred_check_branch
      %633 = sbr.rel (0) target = $region29
    $region28: #{tpu_custom_call.1} parent=1 // pred_region
      %634 = dma.done [#allocation3], 256
    $region29: #{tpu_custom_call.1} parent=1 // pred_fallthru
      _
    %635 = vsyncpa [#allocation3], 1

</llo_original>
